<compile_context>
chip_gen: v5e
topology: v5e:2x2
jax: 0.10.0
libtpu: 0.0.40
codegen_flags: <defaults>
</compile_context>

<pallas_src>
import jax
import jax.numpy as jnp
from jax import lax
from jax.experimental import pallas as pl
from jax.experimental.pallas import tpu as pltpu

# ---- small synthetic shapes consistent with the module -----------------------------
BATCH = 2
OPT = 4            # text.size(1) // topk
HID = 192          # synthetic BERT hidden size, chosen so flattened pooled size == 18
NUM_CLASSES = 15   # answer decoding in forward() uses class ids 0..14
EPS = 1e-5

# MaxPool2d(kernel=(2,32), stride=(2,32), padding=(1,1)), floor mode
POOL_KH, POOL_KW = 2, 32
POOL_SH, POOL_SW = 2, 32
POOL_PH, POOL_PW = 1, 1
HP = (OPT + 2 * POOL_PH - POOL_KH) // POOL_SH + 1
WP = (HID + 2 * POOL_PW - POOL_KW) // POOL_SW + 1
FLAT = HP * WP
assert FLAT == 18, f"flattened conv output must be 18 (Linear in_features), got {FLAT}"
assert OPT == 4 and HP == 3, "height-window decomposition below assumes OPT=4 -> HP=3"

LANE_TILE = 128    # vreg lane width — value slices are split at this boundary


def bertxqa_head_kernel(x_ref, cp_ref, wt_ref, lb_ref, bn1_ref, label_ref,
                        probs_ref, nll_ref):
    """x_ref:    (B, OPT, HID) f32 VMEM -- BERT pooled output (eval: dropout == identity)
       cp_ref:   (6,)    f32 SMEM -- [conv_w, conv_b, bn2_gamma, bn2_beta, bn2_mean, bn2_var]
       wt_ref:   (18, C) f32 VMEM -- Linear weight, pre-transposed (row k = pooled feature k)
       lb_ref:   (1, C)  f32 VMEM -- Linear bias
       bn1_ref:  (4, C)  f32 VMEM -- [gamma; beta; running_mean; running_var]
       label_ref:(B, 1)  i32 VMEM
       probs_ref:(B, C)  f32 VMEM -- softmax output (what forward() calls `logits`)
       nll_ref:  (B, 1)  f32 VMEM -- per-example cross-entropy (mean taken in wrapper)
    """
    x = x_ref[...]                      # (B, OPT, HID)
    B = x.shape[0]

    # --- Conv2d(1,1,1x1) + BatchNorm2d(1) (eval) folded to a scalar affine, then ReLU.
    conv_w = cp_ref[0]
    conv_b = cp_ref[1]
    g2, be2, m2, v2 = cp_ref[2], cp_ref[3], cp_ref[4], cp_ref[5]
    scale2 = g2 * lax.rsqrt(v2 + EPS)
    a = conv_w * scale2
    c = (conv_b - m2) * scale2 + be2
    act = jnp.maximum(a * x + c, 0.0)                        # (B, OPT, HID)

    # --- MaxPool height (sublane/option-row) reduction FIRST:
    # pooled row 0 <- {row 0}; pooled row 1 <- max(row 1, row 2); pooled row 2 <- {row 3}.
    # Padded rows are simply excluded == torch's -inf padding for non-empty windows.
    rows = (
        act[:, 0:1, :],
        jnp.maximum(act[:, 1:2, :], act[:, 2:3, :]),
        act[:, 3:4, :],
    )                                                        # each (B, 1, HID)

    # --- hoisted linear params (review): the whole (18,C) weight lives in-register for
    #     all 18 FMAs; no per-iteration vector loads.
    wt = wt_ref[...]                                         # (18, C)
    lb = lb_ref[...]                                         # (1, C)

    def window_max(row, lo, hi):
        # max over the true torch pool-window columns [lo, hi) of a (B,1,HID) pooled row.
        # Pad columns are never touched (exactly -inf padding semantics).  Slices are split
        # at the 128-lane vreg boundary so every static value slice stays in one lane tile.
        bounds = [(lo, LANE_TILE), (LANE_TILE, hi)] if lo < LANE_TILE < hi else [(lo, hi)]
        m = None
        for (s, e) in bounds:
            part = jnp.max(row[:, :, s:e], axis=2)           # (B, 1)
            m = part if m is None else jnp.maximum(m, part)
        return m

    # --- fused MaxPool lane windows + Linear(18, C): logits = bias + sum_k m_k * W^T[k].
    #     One independent accumulator per pooled row (3 chains of 6 VPU FMAs) — no MXU,
    #     no scatter, short dependency chains.
    partials = []
    for i in range(HP):
        row = rows[i]
        acc_i = jnp.zeros((B, NUM_CLASSES), jnp.float32)
        for j in range(WP):
            lo = max(0, POOL_SW * j - POOL_PW)               # left pad column excluded
            hi = min(HID, POOL_SW * j + POOL_KW - POOL_PW)   # right pad / floor-mode excluded
            m = window_max(row, lo, hi)                      # (B, 1) window max
            k = i * WP + j                                   # row-major flatten order
            acc_i = acc_i + m * wt[k:k + 1, :]               # (B,1) * (1,C) VPU FMA
        partials.append(acc_i)
    logits = (partials[0] + partials[1]) + partials[2] + lb  # (B, C)

    # --- BatchNorm1d(num_classes) (eval)
    gamma1 = bn1_ref[0:1, :]
    beta1 = bn1_ref[1:2, :]
    mean1 = bn1_ref[2:3, :]
    var1 = bn1_ref[3:4, :]
    z = (logits - mean1) * (gamma1 * lax.rsqrt(var1 + EPS)) + beta1    # (B, C)

    # --- softmax (what the torch code calls `logits` afterwards).  EUP approx reciprocal
    #     + one Newton step keeps the divide off the VPU while staying well inside 1e-4.
    z_max = jnp.max(z, axis=-1, keepdims=True)
    ez = jnp.exp(z - z_max)
    denom = jnp.sum(ez, axis=-1, keepdims=True)
    inv = pl.reciprocal(denom, approx=True)
    inv = inv * (2.0 - denom * inv)                          # Newton refinement
    probs = ez * inv
    probs_ref[...] = probs

    # --- CrossEntropyLoss applied (as in the torch code) to the softmax probabilities.
    # max(probs) == inv exactly (the argmax entry of ez is exactly 1.0) — reuse it instead
    # of an extra cross-lane reduction (review).
    p_max = inv
    lse = jnp.log(jnp.sum(jnp.exp(probs - p_max), axis=-1, keepdims=True)) + p_max
    logp = probs - lse                                       # log_softmax(probs), (B, C)

    labels = label_ref[...]                                  # (B, 1) int32
    cls_idx = lax.broadcasted_iota(jnp.int32, (B, NUM_CLASSES), 1)
    nll = jnp.where(cls_idx == labels, -logp, 0.0)           # vectorized one-hot gather
    nll_ref[...] = jnp.sum(nll, axis=1, keepdims=True)       # per-example NLL (B, 1)


@jax.jit
def bertxqa_head(pooled_nchw, conv_params, lin_w, lin_b, bn1_params, label):
    # glue: squeeze the NCHW channel and pre-transpose the linear weight.  No pad/slice
    # pass over x any more — the kernel reads x exactly once from HBM.
    B = pooled_nchw.shape[0]
    x = pooled_nchw.reshape(B, OPT, HID).astype(jnp.float32)
    probs, nll = pl.pallas_call(
        bertxqa_head_kernel,
        out_shape=(
            jax.ShapeDtypeStruct((B, NUM_CLASSES), jnp.float32),
            jax.ShapeDtypeStruct((B, 1), jnp.float32),
        ),
        in_specs=[
            pl.BlockSpec(memory_space=pltpu.MemorySpace.VMEM),   # x
            pl.BlockSpec(memory_space=pltpu.MemorySpace.SMEM),   # conv + bn2d scalars
            pl.BlockSpec(memory_space=pltpu.MemorySpace.VMEM),   # W^T (18, C)
            pl.BlockSpec(memory_space=pltpu.MemorySpace.VMEM),   # bias (1, C)
            pl.BlockSpec(memory_space=pltpu.MemorySpace.VMEM),   # bn1d params (4, C)
            pl.BlockSpec(memory_space=pltpu.MemorySpace.VMEM),   # label (B, 1)
        ],
        out_specs=(
            pl.BlockSpec(memory_space=pltpu.MemorySpace.VMEM),   # probs
            pl.BlockSpec(memory_space=pltpu.MemorySpace.VMEM),   # per-example NLL
        ),
    )(x, conv_params, lin_w.T, lin_b.reshape(1, -1), bn1_params,
      label.astype(jnp.int32).reshape(B, 1))
    # tiny wrapper reduce (review-sanctioned): keeps the kernel free of a shared scalar
    # write so a future parallel batch grid needs no change to the output contract.
    return probs, jnp.mean(nll)


def reference(pooled_nchw, conv_params, lin_w, lin_b, bn1_params, label):
    """Pure-JAX mirror of the torch forward (eval-mode) for validation."""
    B = pooled_nchw.shape[0]
    x = pooled_nchw.reshape(B, OPT, HID).astype(jnp.float32)
    cw, cb, g2, be2, m2, v2 = [conv_params[i] for i in range(6)]
    scale2 = g2 * lax.rsqrt(v2 + EPS)
    act = jnp.maximum((cw * scale2) * x + ((cb - m2) * scale2 + be2), 0.0)
    pooled = lax.reduce_window(
        act, -jnp.inf, lax.max,
        window_dimensions=(1, POOL_KH, POOL_KW),
        window_strides=(1, POOL_SH, POOL_SW),
        padding=((0, 0), (POOL_PH, POOL_PH), (POOL_PW, POOL_PW)),
    ).reshape(B, -1)
    logits = pooled @ lin_w.T + lin_b
    gamma1, beta1, mean1, var1 = bn1_params
    z = (logits - mean1) * (gamma1 * lax.rsqrt(var1 + EPS)) + beta1
    probs = jax.nn.softmax(z, axis=-1)
    logp = jax.nn.log_softmax(probs, axis=-1)
    loss = -jnp.mean(logp[jnp.arange(B), label])
    return probs, loss


if __name__ == "__main__":
    key = jax.random.PRNGKey(0)
    ks = jax.random.split(key, 10)

    # deterministic parameter init (shapes from the module __init__)
    conv_w = 0.1 * jax.random.normal(ks[0], ())                      # Conv2d(1,1,1x1) weight
    conv_b = 0.1 * jax.random.normal(ks[1], ())                      # Conv2d bias
    bn2_gamma = 1.0 + 0.05 * jax.random.normal(ks[2], ())            # BatchNorm2d(1)
    bn2_beta = 0.05 * jax.random.normal(ks[3], ())
    bn2_mean = 0.05 * jax.random.normal(ks[4], ())
    bn2_var = 1.0 + 0.1 * jnp.abs(jax.random.normal(ks[5], ()))
    conv_params = jnp.stack([conv_w, conv_b, bn2_gamma, bn2_beta, bn2_mean, bn2_var]).astype(jnp.float32)

    lin_w = 0.2 * jax.random.normal(ks[6], (NUM_CLASSES, FLAT), jnp.float32)   # Linear(18, C)
    lin_b = 0.1 * jax.random.normal(ks[7], (NUM_CLASSES,), jnp.float32)

    bn1_gamma = 1.0 + 0.05 * jax.random.normal(ks[8], (NUM_CLASSES,), jnp.float32)  # BatchNorm1d(C)
    bn1_beta = 0.05 * jax.random.normal(ks[9], (NUM_CLASSES,), jnp.float32)
    bn1_mean = jnp.zeros((NUM_CLASSES,), jnp.float32)
    bn1_var = jnp.ones((NUM_CLASSES,), jnp.float32)
    bn1_params = jnp.stack([bn1_gamma, bn1_beta, bn1_mean, bn1_var])

    # deterministic example inputs: BERT pooled_output reshaped to NCHW (B, 1, OPT, HID)
    dkey = jax.random.split(jax.random.PRNGKey(0), 3)
    pooled_nchw = jax.random.normal(dkey[0], (BATCH, 1, OPT, HID), jnp.float32)
    label = jax.random.randint(dkey[1], (BATCH,), 0, NUM_CLASSES)
    sorm = jax.random.bernoulli(dkey[2], 0.5, (BATCH,))

    probs, loss = bertxqa_head(pooled_nchw, conv_params, lin_w, lin_b, bn1_params, label)
    jax.block_until_ready((probs, loss))

    ref_probs, ref_loss = reference(pooled_nchw, conv_params, lin_w, lin_b,
                                    (bn1_gamma, bn1_beta, bn1_mean, bn1_var), label)
    assert jnp.allclose(probs, ref_probs, atol=1e-4, rtol=1e-4), "probs mismatch"
    assert jnp.allclose(loss, ref_loss, atol=1e-4, rtol=1e-4), "loss mismatch"

    # host-side answer decoding (mirrors the python tail of forward(); not kernel work)
    MULTI = {4: ['A', 'B'], 5: ['A', 'C'], 6: ['B', 'C'], 7: ['A', 'B', 'C'],
             8: ['A', 'D'], 9: ['B', 'D'], 10: ['A', 'B', 'D'], 11: ['C', 'D'],
             12: ['A', 'C', 'D'], 13: ['B', 'C', 'D'], 14: ['A', 'B', 'C', 'D']}
    predm = jnp.argmax(probs, axis=1)
    preds = jnp.argmax(probs[:, 0:3], axis=1)
    answers = []
    for b in range(BATCH):
        if bool(sorm[b]):
            i = int(predm[b])
            answers.append([chr(ord('A') + i)] if i < 4 else MULTI[i])
        else:
            answers.append(chr(ord('A') + int(preds[b])))
    _ = [{'id': b, 'answer': [ans]} for b, ans in enumerate(answers)]

    print("KERNEL_OK")
</pallas_src>

<mosaic_0001>
module attributes {stable_mosaic.version = 11 : i64} {
  func.func @bertxqa_head_kernel(%arg0: memref<2x4x192xf32, #tpu.memory_space<vmem>>, %arg1: memref<6xf32, #tpu.memory_space<smem>>, %arg2: memref<18x15xf32, #tpu.memory_space<vmem>>, %arg3: memref<1x15xf32, #tpu.memory_space<vmem>>, %arg4: memref<4x15xf32, #tpu.memory_space<vmem>>, %arg5: memref<2x1xi32, #tpu.memory_space<vmem>>, %arg6: memref<2x15xf32, #tpu.memory_space<vmem>>, %arg7: memref<2x1xf32, #tpu.memory_space<vmem>>) attributes {dimension_semantics = [], scalar_prefetch = 0 : i64, scratch_operands = 0 : i64, tpu.core_type = #tpu.core_type<tc>} {
    %c0 = arith.constant 0 : index
    %c0_0 = arith.constant 0 : index
    %c0_1 = arith.constant 0 : index
    %0 = vector.load %arg0[%c0, %c0_0, %c0_1] : memref<2x4x192xf32, #tpu.memory_space<vmem>>, vector<2x4x192xf32>
    %c0_2 = arith.constant 0 : index
    %1 = memref.load %arg1[%c0_2] : memref<6xf32, #tpu.memory_space<smem>>
    %c1 = arith.constant 1 : index
    %2 = memref.load %arg1[%c1] : memref<6xf32, #tpu.memory_space<smem>>
    %c2 = arith.constant 2 : index
    %3 = memref.load %arg1[%c2] : memref<6xf32, #tpu.memory_space<smem>>
    %c3 = arith.constant 3 : index
    %4 = memref.load %arg1[%c3] : memref<6xf32, #tpu.memory_space<smem>>
    %c4 = arith.constant 4 : index
    %5 = memref.load %arg1[%c4] : memref<6xf32, #tpu.memory_space<smem>>
    %c5 = arith.constant 5 : index
    %6 = memref.load %arg1[%c5] : memref<6xf32, #tpu.memory_space<smem>>
    %cst = arith.constant 9.99999974E-6 : f32
    %7 = arith.addf %6, %cst : f32
    %8 = math.rsqrt %7 : f32
    %9 = arith.mulf %3, %8 : f32
    %10 = arith.mulf %1, %9 : f32
    %11 = arith.subf %2, %5 : f32
    %12 = arith.mulf %11, %9 : f32
    %13 = arith.addf %12, %4 : f32
    %14 = vector.broadcast %10 : f32 to vector<2x4x192xf32>
    %15 = arith.mulf %14, %0 : vector<2x4x192xf32>
    %16 = vector.broadcast %13 : f32 to vector<2x4x192xf32>
    %17 = arith.addf %15, %16 : vector<2x4x192xf32>
    %cst_3 = arith.constant 0.000000e+00 : f32
    %18 = vector.broadcast %cst_3 : f32 to vector<2x4x192xf32>
    %19 = arith.maximumf %17, %18 : vector<2x4x192xf32>
    %20 = vector.extract_strided_slice %19 {offsets = [0, 0, 0], sizes = [2, 1, 192], strides = [1, 1, 1]} : vector<2x4x192xf32> to vector<2x1x192xf32>
    %21 = vector.extract_strided_slice %19 {offsets = [0, 1, 0], sizes = [2, 1, 192], strides = [1, 1, 1]} : vector<2x4x192xf32> to vector<2x1x192xf32>
    %22 = vector.extract_strided_slice %19 {offsets = [0, 2, 0], sizes = [2, 1, 192], strides = [1, 1, 1]} : vector<2x4x192xf32> to vector<2x1x192xf32>
    %23 = arith.maximumf %21, %22 : vector<2x1x192xf32>
    %24 = vector.extract_strided_slice %19 {offsets = [0, 3, 0], sizes = [2, 1, 192], strides = [1, 1, 1]} : vector<2x4x192xf32> to vector<2x1x192xf32>
    %c0_4 = arith.constant 0 : index
    %c0_5 = arith.constant 0 : index
    %25 = vector.load %arg2[%c0_4, %c0_5] : memref<18x15xf32, #tpu.memory_space<vmem>>, vector<18x15xf32>
    %c0_6 = arith.constant 0 : index
    %c0_7 = arith.constant 0 : index
    %26 = vector.load %arg3[%c0_6, %c0_7] : memref<1x15xf32, #tpu.memory_space<vmem>>, vector<1x15xf32>
    %cst_8 = arith.constant 0.000000e+00 : f32
    %27 = vector.broadcast %cst_8 : f32 to vector<2x15xf32>
    %28 = vector.extract_strided_slice %20 {offsets = [0, 0, 0], sizes = [2, 1, 31], strides = [1, 1, 1]} : vector<2x1x192xf32> to vector<2x1x31xf32>
    %cst_9 = arith.constant dense<0xFF800000> : vector<2x1xf32>
    %29 = vector.multi_reduction <maximumf>, %28, %cst_9 [2] : vector<2x1x31xf32> to vector<2x1xf32>
    %30 = vector.extract_strided_slice %25 {offsets = [0, 0], sizes = [1, 15], strides = [1, 1]} : vector<18x15xf32> to vector<1x15xf32>
    %31 = vector.broadcast %29 : vector<2x1xf32> to vector<2x15xf32>
    %32 = vector.broadcast %30 : vector<1x15xf32> to vector<2x15xf32>
    %33 = arith.mulf %31, %32 : vector<2x15xf32>
    %34 = arith.addf %27, %33 : vector<2x15xf32>
    %35 = vector.extract_strided_slice %20 {offsets = [0, 0, 31], sizes = [2, 1, 32], strides = [1, 1, 1]} : vector<2x1x192xf32> to vector<2x1x32xf32>
    %cst_10 = arith.constant dense<0xFF800000> : vector<2x1xf32>
    %36 = vector.multi_reduction <maximumf>, %35, %cst_10 [2] : vector<2x1x32xf32> to vector<2x1xf32>
    %37 = vector.extract_strided_slice %25 {offsets = [1, 0], sizes = [1, 15], strides = [1, 1]} : vector<18x15xf32> to vector<1x15xf32>
    %38 = vector.broadcast %36 : vector<2x1xf32> to vector<2x15xf32>
    %39 = vector.broadcast %37 : vector<1x15xf32> to vector<2x15xf32>
    %40 = arith.mulf %38, %39 : vector<2x15xf32>
    %41 = arith.addf %34, %40 : vector<2x15xf32>
    %42 = vector.extract_strided_slice %20 {offsets = [0, 0, 63], sizes = [2, 1, 32], strides = [1, 1, 1]} : vector<2x1x192xf32> to vector<2x1x32xf32>
    %cst_11 = arith.constant dense<0xFF800000> : vector<2x1xf32>
    %43 = vector.multi_reduction <maximumf>, %42, %cst_11 [2] : vector<2x1x32xf32> to vector<2x1xf32>
    %44 = vector.extract_strided_slice %25 {offsets = [2, 0], sizes = [1, 15], strides = [1, 1]} : vector<18x15xf32> to vector<1x15xf32>
    %45 = vector.broadcast %43 : vector<2x1xf32> to vector<2x15xf32>
    %46 = vector.broadcast %44 : vector<1x15xf32> to vector<2x15xf32>
    %47 = arith.mulf %45, %46 : vector<2x15xf32>
    %48 = arith.addf %41, %47 : vector<2x15xf32>
    %49 = vector.extract_strided_slice %20 {offsets = [0, 0, 95], sizes = [2, 1, 32], strides = [1, 1, 1]} : vector<2x1x192xf32> to vector<2x1x32xf32>
    %cst_12 = arith.constant dense<0xFF800000> : vector<2x1xf32>
    %50 = vector.multi_reduction <maximumf>, %49, %cst_12 [2] : vector<2x1x32xf32> to vector<2x1xf32>
    %51 = vector.extract_strided_slice %25 {offsets = [3, 0], sizes = [1, 15], strides = [1, 1]} : vector<18x15xf32> to vector<1x15xf32>
    %52 = vector.broadcast %50 : vector<2x1xf32> to vector<2x15xf32>
    %53 = vector.broadcast %51 : vector<1x15xf32> to vector<2x15xf32>
    %54 = arith.mulf %52, %53 : vector<2x15xf32>
    %55 = arith.addf %48, %54 : vector<2x15xf32>
    %56 = vector.extract_strided_slice %20 {offsets = [0, 0, 127], sizes = [2, 1, 1], strides = [1, 1, 1]} : vector<2x1x192xf32> to vector<2x1x1xf32>
    %cst_13 = arith.constant dense<0xFF800000> : vector<2x1xf32>
    %57 = vector.multi_reduction <maximumf>, %56, %cst_13 [2] : vector<2x1x1xf32> to vector<2x1xf32>
    %58 = vector.extract_strided_slice %20 {offsets = [0, 0, 128], sizes = [2, 1, 31], strides = [1, 1, 1]} : vector<2x1x192xf32> to vector<2x1x31xf32>
    %cst_14 = arith.constant dense<0xFF800000> : vector<2x1xf32>
    %59 = vector.multi_reduction <maximumf>, %58, %cst_14 [2] : vector<2x1x31xf32> to vector<2x1xf32>
    %60 = arith.maximumf %57, %59 : vector<2x1xf32>
    %61 = vector.extract_strided_slice %25 {offsets = [4, 0], sizes = [1, 15], strides = [1, 1]} : vector<18x15xf32> to vector<1x15xf32>
    %62 = vector.broadcast %60 : vector<2x1xf32> to vector<2x15xf32>
    %63 = vector.broadcast %61 : vector<1x15xf32> to vector<2x15xf32>
    %64 = arith.mulf %62, %63 : vector<2x15xf32>
    %65 = arith.addf %55, %64 : vector<2x15xf32>
    %66 = vector.extract_strided_slice %20 {offsets = [0, 0, 159], sizes = [2, 1, 32], strides = [1, 1, 1]} : vector<2x1x192xf32> to vector<2x1x32xf32>
    %cst_15 = arith.constant dense<0xFF800000> : vector<2x1xf32>
    %67 = vector.multi_reduction <maximumf>, %66, %cst_15 [2] : vector<2x1x32xf32> to vector<2x1xf32>
    %68 = vector.extract_strided_slice %25 {offsets = [5, 0], sizes = [1, 15], strides = [1, 1]} : vector<18x15xf32> to vector<1x15xf32>
    %69 = vector.broadcast %67 : vector<2x1xf32> to vector<2x15xf32>
    %70 = vector.broadcast %68 : vector<1x15xf32> to vector<2x15xf32>
    %71 = arith.mulf %69, %70 : vector<2x15xf32>
    %72 = arith.addf %65, %71 : vector<2x15xf32>
    %cst_16 = arith.constant 0.000000e+00 : f32
    %73 = vector.broadcast %cst_16 : f32 to vector<2x15xf32>
    %74 = vector.extract_strided_slice %23 {offsets = [0, 0, 0], sizes = [2, 1, 31], strides = [1, 1, 1]} : vector<2x1x192xf32> to vector<2x1x31xf32>
    %cst_17 = arith.constant dense<0xFF800000> : vector<2x1xf32>
    %75 = vector.multi_reduction <maximumf>, %74, %cst_17 [2] : vector<2x1x31xf32> to vector<2x1xf32>
    %76 = vector.extract_strided_slice %25 {offsets = [6, 0], sizes = [1, 15], strides = [1, 1]} : vector<18x15xf32> to vector<1x15xf32>
    %77 = vector.broadcast %75 : vector<2x1xf32> to vector<2x15xf32>
    %78 = vector.broadcast %76 : vector<1x15xf32> to vector<2x15xf32>
    %79 = arith.mulf %77, %78 : vector<2x15xf32>
    %80 = arith.addf %73, %79 : vector<2x15xf32>
    %81 = vector.extract_strided_slice %23 {offsets = [0, 0, 31], sizes = [2, 1, 32], strides = [1, 1, 1]} : vector<2x1x192xf32> to vector<2x1x32xf32>
    %cst_18 = arith.constant dense<0xFF800000> : vector<2x1xf32>
    %82 = vector.multi_reduction <maximumf>, %81, %cst_18 [2] : vector<2x1x32xf32> to vector<2x1xf32>
    %83 = vector.extract_strided_slice %25 {offsets = [7, 0], sizes = [1, 15], strides = [1, 1]} : vector<18x15xf32> to vector<1x15xf32>
    %84 = vector.broadcast %82 : vector<2x1xf32> to vector<2x15xf32>
    %85 = vector.broadcast %83 : vector<1x15xf32> to vector<2x15xf32>
    %86 = arith.mulf %84, %85 : vector<2x15xf32>
    %87 = arith.addf %80, %86 : vector<2x15xf32>
    %88 = vector.extract_strided_slice %23 {offsets = [0, 0, 63], sizes = [2, 1, 32], strides = [1, 1, 1]} : vector<2x1x192xf32> to vector<2x1x32xf32>
    %cst_19 = arith.constant dense<0xFF800000> : vector<2x1xf32>
    %89 = vector.multi_reduction <maximumf>, %88, %cst_19 [2] : vector<2x1x32xf32> to vector<2x1xf32>
    %90 = vector.extract_strided_slice %25 {offsets = [8, 0], sizes = [1, 15], strides = [1, 1]} : vector<18x15xf32> to vector<1x15xf32>
    %91 = vector.broadcast %89 : vector<2x1xf32> to vector<2x15xf32>
    %92 = vector.broadcast %90 : vector<1x15xf32> to vector<2x15xf32>
    %93 = arith.mulf %91, %92 : vector<2x15xf32>
    %94 = arith.addf %87, %93 : vector<2x15xf32>
    %95 = vector.extract_strided_slice %23 {offsets = [0, 0, 95], sizes = [2, 1, 32], strides = [1, 1, 1]} : vector<2x1x192xf32> to vector<2x1x32xf32>
    %cst_20 = arith.constant dense<0xFF800000> : vector<2x1xf32>
    %96 = vector.multi_reduction <maximumf>, %95, %cst_20 [2] : vector<2x1x32xf32> to vector<2x1xf32>
    %97 = vector.extract_strided_slice %25 {offsets = [9, 0], sizes = [1, 15], strides = [1, 1]} : vector<18x15xf32> to vector<1x15xf32>
    %98 = vector.broadcast %96 : vector<2x1xf32> to vector<2x15xf32>
    %99 = vector.broadcast %97 : vector<1x15xf32> to vector<2x15xf32>
    %100 = arith.mulf %98, %99 : vector<2x15xf32>
    %101 = arith.addf %94, %100 : vector<2x15xf32>
    %102 = vector.extract_strided_slice %23 {offsets = [0, 0, 127], sizes = [2, 1, 1], strides = [1, 1, 1]} : vector<2x1x192xf32> to vector<2x1x1xf32>
    %cst_21 = arith.constant dense<0xFF800000> : vector<2x1xf32>
    %103 = vector.multi_reduction <maximumf>, %102, %cst_21 [2] : vector<2x1x1xf32> to vector<2x1xf32>
    %104 = vector.extract_strided_slice %23 {offsets = [0, 0, 128], sizes = [2, 1, 31], strides = [1, 1, 1]} : vector<2x1x192xf32> to vector<2x1x31xf32>
    %cst_22 = arith.constant dense<0xFF800000> : vector<2x1xf32>
    %105 = vector.multi_reduction <maximumf>, %104, %cst_22 [2] : vector<2x1x31xf32> to vector<2x1xf32>
    %106 = arith.maximumf %103, %105 : vector<2x1xf32>
    %107 = vector.extract_strided_slice %25 {offsets = [10, 0], sizes = [1, 15], strides = [1, 1]} : vector<18x15xf32> to vector<1x15xf32>
    %108 = vector.broadcast %106 : vector<2x1xf32> to vector<2x15xf32>
    %109 = vector.broadcast %107 : vector<1x15xf32> to vector<2x15xf32>
    %110 = arith.mulf %108, %109 : vector<2x15xf32>
    %111 = arith.addf %101, %110 : vector<2x15xf32>
    %112 = vector.extract_strided_slice %23 {offsets = [0, 0, 159], sizes = [2, 1, 32], strides = [1, 1, 1]} : vector<2x1x192xf32> to vector<2x1x32xf32>
    %cst_23 = arith.constant dense<0xFF800000> : vector<2x1xf32>
    %113 = vector.multi_reduction <maximumf>, %112, %cst_23 [2] : vector<2x1x32xf32> to vector<2x1xf32>
    %114 = vector.extract_strided_slice %25 {offsets = [11, 0], sizes = [1, 15], strides = [1, 1]} : vector<18x15xf32> to vector<1x15xf32>
    %115 = vector.broadcast %113 : vector<2x1xf32> to vector<2x15xf32>
    %116 = vector.broadcast %114 : vector<1x15xf32> to vector<2x15xf32>
    %117 = arith.mulf %115, %116 : vector<2x15xf32>
    %118 = arith.addf %111, %117 : vector<2x15xf32>
    %cst_24 = arith.constant 0.000000e+00 : f32
    %119 = vector.broadcast %cst_24 : f32 to vector<2x15xf32>
    %120 = vector.extract_strided_slice %24 {offsets = [0, 0, 0], sizes = [2, 1, 31], strides = [1, 1, 1]} : vector<2x1x192xf32> to vector<2x1x31xf32>
    %cst_25 = arith.constant dense<0xFF800000> : vector<2x1xf32>
    %121 = vector.multi_reduction <maximumf>, %120, %cst_25 [2] : vector<2x1x31xf32> to vector<2x1xf32>
    %122 = vector.extract_strided_slice %25 {offsets = [12, 0], sizes = [1, 15], strides = [1, 1]} : vector<18x15xf32> to vector<1x15xf32>
    %123 = vector.broadcast %121 : vector<2x1xf32> to vector<2x15xf32>
    %124 = vector.broadcast %122 : vector<1x15xf32> to vector<2x15xf32>
    %125 = arith.mulf %123, %124 : vector<2x15xf32>
    %126 = arith.addf %119, %125 : vector<2x15xf32>
    %127 = vector.extract_strided_slice %24 {offsets = [0, 0, 31], sizes = [2, 1, 32], strides = [1, 1, 1]} : vector<2x1x192xf32> to vector<2x1x32xf32>
    %cst_26 = arith.constant dense<0xFF800000> : vector<2x1xf32>
    %128 = vector.multi_reduction <maximumf>, %127, %cst_26 [2] : vector<2x1x32xf32> to vector<2x1xf32>
    %129 = vector.extract_strided_slice %25 {offsets = [13, 0], sizes = [1, 15], strides = [1, 1]} : vector<18x15xf32> to vector<1x15xf32>
    %130 = vector.broadcast %128 : vector<2x1xf32> to vector<2x15xf32>
    %131 = vector.broadcast %129 : vector<1x15xf32> to vector<2x15xf32>
    %132 = arith.mulf %130, %131 : vector<2x15xf32>
    %133 = arith.addf %126, %132 : vector<2x15xf32>
    %134 = vector.extract_strided_slice %24 {offsets = [0, 0, 63], sizes = [2, 1, 32], strides = [1, 1, 1]} : vector<2x1x192xf32> to vector<2x1x32xf32>
    %cst_27 = arith.constant dense<0xFF800000> : vector<2x1xf32>
    %135 = vector.multi_reduction <maximumf>, %134, %cst_27 [2] : vector<2x1x32xf32> to vector<2x1xf32>
    %136 = vector.extract_strided_slice %25 {offsets = [14, 0], sizes = [1, 15], strides = [1, 1]} : vector<18x15xf32> to vector<1x15xf32>
    %137 = vector.broadcast %135 : vector<2x1xf32> to vector<2x15xf32>
    %138 = vector.broadcast %136 : vector<1x15xf32> to vector<2x15xf32>
    %139 = arith.mulf %137, %138 : vector<2x15xf32>
    %140 = arith.addf %133, %139 : vector<2x15xf32>
    %141 = vector.extract_strided_slice %24 {offsets = [0, 0, 95], sizes = [2, 1, 32], strides = [1, 1, 1]} : vector<2x1x192xf32> to vector<2x1x32xf32>
    %cst_28 = arith.constant dense<0xFF800000> : vector<2x1xf32>
    %142 = vector.multi_reduction <maximumf>, %141, %cst_28 [2] : vector<2x1x32xf32> to vector<2x1xf32>
    %143 = vector.extract_strided_slice %25 {offsets = [15, 0], sizes = [1, 15], strides = [1, 1]} : vector<18x15xf32> to vector<1x15xf32>
    %144 = vector.broadcast %142 : vector<2x1xf32> to vector<2x15xf32>
    %145 = vector.broadcast %143 : vector<1x15xf32> to vector<2x15xf32>
    %146 = arith.mulf %144, %145 : vector<2x15xf32>
    %147 = arith.addf %140, %146 : vector<2x15xf32>
    %148 = vector.extract_strided_slice %24 {offsets = [0, 0, 127], sizes = [2, 1, 1], strides = [1, 1, 1]} : vector<2x1x192xf32> to vector<2x1x1xf32>
    %cst_29 = arith.constant dense<0xFF800000> : vector<2x1xf32>
    %149 = vector.multi_reduction <maximumf>, %148, %cst_29 [2] : vector<2x1x1xf32> to vector<2x1xf32>
    %150 = vector.extract_strided_slice %24 {offsets = [0, 0, 128], sizes = [2, 1, 31], strides = [1, 1, 1]} : vector<2x1x192xf32> to vector<2x1x31xf32>
    %cst_30 = arith.constant dense<0xFF800000> : vector<2x1xf32>
    %151 = vector.multi_reduction <maximumf>, %150, %cst_30 [2] : vector<2x1x31xf32> to vector<2x1xf32>
    %152 = arith.maximumf %149, %151 : vector<2x1xf32>
    %153 = vector.extract_strided_slice %25 {offsets = [16, 0], sizes = [1, 15], strides = [1, 1]} : vector<18x15xf32> to vector<1x15xf32>
    %154 = vector.broadcast %152 : vector<2x1xf32> to vector<2x15xf32>
    %155 = vector.broadcast %153 : vector<1x15xf32> to vector<2x15xf32>
    %156 = arith.mulf %154, %155 : vector<2x15xf32>
    %157 = arith.addf %147, %156 : vector<2x15xf32>
    %158 = vector.extract_strided_slice %24 {offsets = [0, 0, 159], sizes = [2, 1, 32], strides = [1, 1, 1]} : vector<2x1x192xf32> to vector<2x1x32xf32>
    %cst_31 = arith.constant dense<0xFF800000> : vector<2x1xf32>
    %159 = vector.multi_reduction <maximumf>, %158, %cst_31 [2] : vector<2x1x32xf32> to vector<2x1xf32>
    %160 = vector.extract_strided_slice %25 {offsets = [17, 0], sizes = [1, 15], strides = [1, 1]} : vector<18x15xf32> to vector<1x15xf32>
    %161 = vector.broadcast %159 : vector<2x1xf32> to vector<2x15xf32>
    %162 = vector.broadcast %160 : vector<1x15xf32> to vector<2x15xf32>
    %163 = arith.mulf %161, %162 : vector<2x15xf32>
    %164 = arith.addf %157, %163 : vector<2x15xf32>
    %165 = arith.addf %72, %118 : vector<2x15xf32>
    %166 = arith.addf %165, %164 : vector<2x15xf32>
    %167 = vector.broadcast %26 : vector<1x15xf32> to vector<2x15xf32>
    %168 = arith.addf %166, %167 : vector<2x15xf32>
    %c0_32 = arith.constant 0 : index
    %c0_33 = arith.constant 0 : index
    %169 = vector.load %arg4[%c0_32, %c0_33] : memref<4x15xf32, #tpu.memory_space<vmem>>, vector<1x15xf32>
    %c1_34 = arith.constant 1 : index
    %c0_35 = arith.constant 0 : index
    %170 = vector.load %arg4[%c1_34, %c0_35] : memref<4x15xf32, #tpu.memory_space<vmem>>, vector<1x15xf32>
    %c2_36 = arith.constant 2 : index
    %c0_37 = arith.constant 0 : index
    %171 = vector.load %arg4[%c2_36, %c0_37] : memref<4x15xf32, #tpu.memory_space<vmem>>, vector<1x15xf32>
    %c3_38 = arith.constant 3 : index
    %c0_39 = arith.constant 0 : index
    %172 = vector.load %arg4[%c3_38, %c0_39] : memref<4x15xf32, #tpu.memory_space<vmem>>, vector<1x15xf32>
    %173 = vector.broadcast %171 : vector<1x15xf32> to vector<2x15xf32>
    %174 = arith.subf %168, %173 : vector<2x15xf32>
    %cst_40 = arith.constant 9.99999974E-6 : f32
    %175 = vector.broadcast %cst_40 : f32 to vector<1x15xf32>
    %176 = arith.addf %172, %175 : vector<1x15xf32>
    %177 = math.rsqrt %176 : vector<1x15xf32>
    %178 = arith.mulf %169, %177 : vector<1x15xf32>
    %179 = vector.broadcast %178 : vector<1x15xf32> to vector<2x15xf32>
    %180 = arith.mulf %174, %179 : vector<2x15xf32>
    %181 = vector.broadcast %170 : vector<1x15xf32> to vector<2x15xf32>
    %182 = arith.addf %180, %181 : vector<2x15xf32>
    %cst_41 = arith.constant dense<0xFF800000> : vector<2xf32>
    %183 = vector.multi_reduction <maximumf>, %182, %cst_41 [1] : vector<2x15xf32> to vector<2xf32>
    %184 = vector.shape_cast %183 : vector<2xf32> to vector<2x1xf32>
    %185 = vector.broadcast %184 : vector<2x1xf32> to vector<2x15xf32>
    %186 = arith.subf %182, %185 : vector<2x15xf32>
    %187 = math.exp %186 : vector<2x15xf32>
    %cst_42 = arith.constant dense<0.000000e+00> : vector<2xf32>
    %188 = vector.multi_reduction <add>, %187, %cst_42 [1] : vector<2x15xf32> to vector<2xf32>
    %189 = vector.shape_cast %188 : vector<2xf32> to vector<2x1xf32>
    %190 = tpu.reciprocal %189 {approx = true} : vector<2x1xf32> -> vector<2x1xf32>
    %191 = arith.mulf %189, %190 : vector<2x1xf32>
    %cst_43 = arith.constant 2.000000e+00 : f32
    %192 = vector.broadcast %cst_43 : f32 to vector<2x1xf32>
    %193 = arith.subf %192, %191 : vector<2x1xf32>
    %194 = arith.mulf %190, %193 : vector<2x1xf32>
    %195 = vector.broadcast %194 : vector<2x1xf32> to vector<2x15xf32>
    %196 = arith.mulf %187, %195 : vector<2x15xf32>
    %c0_44 = arith.constant 0 : index
    %c0_45 = arith.constant 0 : index
    %197 = vector.load %arg6[%c0_44, %c0_45] : memref<2x15xf32, #tpu.memory_space<vmem>>, vector<2x15xf32>
    tpu.vector_store %arg6[%c0_44, %c0_45], %196 {strides = array<i32>} : memref<2x15xf32, #tpu.memory_space<vmem>>, vector<2x15xf32>,
    %198 = vector.broadcast %194 : vector<2x1xf32> to vector<2x15xf32>
    %199 = arith.subf %196, %198 : vector<2x15xf32>
    %200 = math.exp %199 : vector<2x15xf32>
    %cst_46 = arith.constant dense<0.000000e+00> : vector<2xf32>
    %201 = vector.multi_reduction <add>, %200, %cst_46 [1] : vector<2x15xf32> to vector<2xf32>
    %202 = vector.shape_cast %201 : vector<2xf32> to vector<2x1xf32>
    %203 = math.log %202 : vector<2x1xf32>
    %204 = arith.addf %203, %194 : vector<2x1xf32>
    %205 = vector.broadcast %204 : vector<2x1xf32> to vector<2x15xf32>
    %206 = arith.subf %196, %205 : vector<2x15xf32>
    %c0_47 = arith.constant 0 : index
    %c0_48 = arith.constant 0 : index
    %207 = vector.load %arg5[%c0_47, %c0_48] : memref<2x1xi32, #tpu.memory_space<vmem>>, vector<2x1xi32>
    %208 = tpu.iota {dimensions = array<i32: 1>} : vector<2x15xi32>
    %209 = vector.broadcast %207 : vector<2x1xi32> to vector<2x15xi32>
    %210 = arith.cmpi eq, %208, %209 : vector<2x15xi32>
    %cst_49 = arith.constant 0.000000e+00 : f32
    %211 = vector.broadcast %cst_49 : f32 to vector<2x15xf32>
    %212 = arith.subf %211, %206 : vector<2x15xf32>
    %cst_50 = arith.constant 0.000000e+00 : f32
    %213 = vector.broadcast %cst_50 : f32 to vector<2x15xf32>
    %214 = arith.select %210, %212, %213 : vector<2x15xi1>, vector<2x15xf32>
    %cst_51 = arith.constant dense<0.000000e+00> : vector<2xf32>
    %215 = vector.multi_reduction <add>, %214, %cst_51 [1] : vector<2x15xf32> to vector<2xf32>
    %216 = vector.shape_cast %215 : vector<2xf32> to vector<2x1xf32>
    %c0_52 = arith.constant 0 : index
    %c0_53 = arith.constant 0 : index
    %217 = vector.load %arg7[%c0_52, %c0_53] : memref<2x1xf32, #tpu.memory_space<vmem>>, vector<2x1xf32>
    tpu.vector_store %arg7[%c0_52, %c0_53], %216 {strides = array<i32>} : memref<2x1xf32, #tpu.memory_space<vmem>>, vector<2x1xf32>,
    return
  }
}

</mosaic_0001>

<llo_original>
// kernel: bertxqa_head.1
$region0: #{bertxqa_head.1}
  #allocation0 [shape = 'u32[]', space=smem, size = 0x4, offset = 0x4, fixed_abs, tag = 'smem constant byte address 0x4 - core index']
  #allocation1 [shape = 'u32[72,128]{1,0:T(1,128)}', space=vmem, size = 0x9000, scoped, tag = 'internal scratch']
  %s0 = inlined_call_operand.vmem [shape: f32[2,4,192], index: 0, kind: input, shape index: {}]
  %s1 = inlined_call_operand.vmem [shape: f32[6], index: 1, kind: input, shape index: {}]
  %s2 = inlined_call_operand.vmem [shape: f32[18,15], index: 2, kind: input, shape index: {}]
  %s3 = inlined_call_operand.vmem [shape: f32[1,15], index: 3, kind: input, shape index: {}]
  %s4 = inlined_call_operand.vmem [shape: f32[4,15], index: 4, kind: input, shape index: {}]
  %s5 = inlined_call_operand.vmem [shape: s32[2,1], index: 5, kind: input, shape index: {}]
  %s6 = inlined_call_operand.hbm [shape: f32[2,15], index: 6, kind: output, shape index: {0}]
  %s7 = inlined_call_operand.vmem [shape: f32[2,1], index: 7, kind: output, shape index: {1}]
  %8 = xla_tuple %s6, %s7
  %s9 = sld [smem:[#allocation0]]
  $region46: #{bertxqa_head.1} parent=0
    _
  %s11 = ssub.s32 1, %s9
  %s12 = scalar_select 0, %s11, %s9
  $region1: #{bertxqa_head.1} parent=0
    #allocation2 [shape = 'u8[512]{0}', space=smem, size = 0x200, scoped, tag = 'input window, operand 1, single buffered']
    #allocation3 [shape = 's32[1]{0}', space=sflag, size = 0x4, scoped, tag = 'scoped memory for bertxqa_head.1']
    #allocation4 [shape = 's32[1]{0}', space=sflag, size = 0x4, scoped, tag = 'scoped memory for bertxqa_head.1']
    #allocation5 [shape = 'u8[1024]{0}', space=vmem, size = 0x400, scoped, tag = 'output window, operand 0, single buffered']
    %13 = vsyncpa [#allocation4], 0
    %14 = vsyncpa [#allocation3], 0
    // Predicated region
    $region2: #{bertxqa_head.1} parent=1 // pred_check
      _
    $region3: #{bertxqa_head.1} parent=1 // pred_check_branch
      %16 = sbr.rel (0) target = $region5
    $region4: #{bertxqa_head.1} parent=1 // pred_region
      _
    $region5: #{bertxqa_head.1} parent=1 // pred_fallthru
      _
    // Predicated region
    $region6: #{bertxqa_head.1} parent=1 // pred_check
      _
    $region7: #{bertxqa_head.1} parent=1 // pred_check_branch
      %18 = sbr.rel (0) target = $region9
    $region8: #{bertxqa_head.1} parent=1 // pred_region
      %20 = vsyncadd [#allocation4], 0
      %s22 = sshll.u32 %s1, 4
      %s23 = int_to_ptr.vmem [resolvable:$true] %s22
      %25 = dma.vmem_to_smem %s23, 16, [#allocation2], [#allocation4]
    $region9: #{bertxqa_head.1} parent=1 // pred_fallthru
      _
    // Predicated region
    $region10: #{bertxqa_head.1} parent=1 // pred_check
      _
    $region11: #{bertxqa_head.1} parent=1 // pred_check_branch
      %27 = sbr.rel (0) target = $region13
    $region12: #{bertxqa_head.1} parent=1 // pred_region
      _
    $region13: #{bertxqa_head.1} parent=1 // pred_fallthru
      _
    // Predicated region
    $region14: #{bertxqa_head.1} parent=1 // pred_check
      _
    $region15: #{bertxqa_head.1} parent=1 // pred_check_branch
      %29 = sbr.rel (0) target = $region17
    $region16: #{bertxqa_head.1} parent=1 // pred_region
      _
    $region17: #{bertxqa_head.1} parent=1 // pred_fallthru
      _
    // Predicated region
    $region18: #{bertxqa_head.1} parent=1 // pred_check
      _
    $region19: #{bertxqa_head.1} parent=1 // pred_check_branch
      %31 = sbr.rel (0) target = $region21
    $region20: #{bertxqa_head.1} parent=1 // pred_region
      _
    $region21: #{bertxqa_head.1} parent=1 // pred_fallthru
      _
    // Predicated region
    $region22: #{bertxqa_head.1} parent=1 // pred_check
      _
    $region23: #{bertxqa_head.1} parent=1 // pred_check_branch
      %33 = sbr.rel (0) target = $region25
    $region24: #{bertxqa_head.1} parent=1 // pred_region
      _
    $region25: #{bertxqa_head.1} parent=1 // pred_fallthru
      _
    // Predicated region
    $region26: #{bertxqa_head.1} parent=1 // pred_check
      _
    $region27: #{bertxqa_head.1} parent=1 // pred_check_branch
      %35 = sbr.rel (0) target = $region29
    $region28: #{bertxqa_head.1} parent=1 // pred_region
      %37 = dma.done [#allocation4], 16
    $region29: #{bertxqa_head.1} parent=1 // pred_fallthru
      _
    %38 = sfence
    %v39 = vld [vmem:[%s0] sm:$0xff]
    %v40 = vld [vmem:[%s0 + $0x8] sm:$0xff]
    %s41 = sld [smem:[#allocation2]]
    %s42 = sld [smem:[#allocation2 + $0x1]]
    %s43 = sld [smem:[#allocation2 + $0x2]]
    %s44 = sld [smem:[#allocation2 + $0x3]]
    %s45 = sld [smem:[#allocation2 + $0x4]]
    %s46 = sld [smem:[#allocation2 + $0x5]]
    %s47 = sadd.f32 %s46, 1e-05
    %v48 = vstv %s47
    %v49 = vrsqrt.pop %v48
    %v50 = vmul.f32 %v49, %v48
    %v51 = vmul.f32 %v50, %v49
    %v52 = vmul.f32 0.5, %v51
    %v53 = vsub.f32 1.5, %v52
    %v54 = vmul.f32 %v49, %v53
    %vm55 = vweird.f32 %v48
    %vm56 = vweird.f32 %v49
    %vm57 = vmor %vm55, %vm56
    %v58 = vsel %vm57, %v49, %v54
    %s59 = vtos %v58
    %s60 = smul.f32 %s43, %s59
    %s61 = smul.f32 %s41, %s60
    %s62 = ssub.f32 %s42, %s45
    %s63 = smul.f32 %s62, %s60
    %s64 = sadd.f32 %s63, %s44
    %v65 = vstv %s61
    %v66 = vmul.f32 %v65, %v39
    %v67 = vmul.f32 %v65, %v40
    %v68 = vstv %s64
    %v69 = vadd.f32 %v66, %v68
    %v70 = vadd.f32 %v67, %v68
    %v71 = vmax.f32 %v69, 0.0
    %v72 = vmax.f32 %v70, 0.0
    %v75 = vrot.slane %v71, 5
    %v76 = vrot.slane %v75, 4
    %v77 = vrot.slane %v72, 5
    %v78 = vrot.slane %v77, 4
    %v81 = vmax.f32 %v71, %v76
    %v82 = vmax.f32 %v72, %v78
    %v83 = vld [vmem:[%s2] sm:$0xff]
    %v84 = vld [vmem:[%s2 + $0x8] sm:$0xff]
    %v85 = vld [vmem:[%s2 + $0x10] sm:$0x3]
    %v86 = vld [vmem:[%s3] sm:$0x1]
    %vm87 = vcmask 245760
    %v88 = vsel %vm87, %v71, -inf
    %89 = vmax.xlane.f32.xlu0 %v88
    %v90 = vpop.xlane.xlu0 %89
    %v91 = vsel %vm87, %v72, -inf
    %92 = vmax.xlane.f32.xlu0 %v91
    %v93 = vpop.xlane.xlu0 %92
    %v94 = vperm.slane %v90, 0
    %v95 = vperm.slane %v93, 0
    %v96 = vperm.slane %v83, 0
    %v98 = vlaneseq
    %v99 = vshrl.u32 %v98, 7
    %101 = vset.pattern.permute.xlu0 %v99
    %102 = vperm.xlu0 %101, %v96
    %v103 = vpop.permute.xlu0 %102
    %v104 = vlaneseq
    %v105 = vshrl.u32 %v104, 7
    %v106 = vadd.s32 %v105, 8
    %107 = vset.pattern.permute.xlu0 %v106
    %108 = vperm.xlu0 %107, %v96
    %v109 = vpop.permute.xlu0 %108
    %v112 = vmul.f32 %v94, %v103
    %v113 = vmul.f32 %v94, %v109
    %v114 = vmul.f32 %v95, %v103
    %v115 = vmul.f32 %v95, %v109
    %v116 = vadd.f32 %v112, 0.0
    %v117 = vadd.f32 %v113, 0.0
    %v118 = vadd.f32 %v114, 0.0
    %v119 = vadd.f32 %v115, 0.0
    %vm120 = vcmask 508152
    %v121 = vsel %vm120, %v71, -inf
    %122 = vmax.xlane.f32.xlu0 %v121
    %v123 = vpop.xlane.xlu0 %122
    %v124 = vsel %vm120, %v72, -inf
    %125 = vmax.xlane.f32.xlu0 %v124
    %v126 = vpop.xlane.xlu0 %125
    %v127 = vperm.slane %v123, 0
    %v128 = vperm.slane %v126, 0
    %v129 = vperm.slane %v83, 1
    %v131 = vlaneseq
    %v132 = vshrl.u32 %v131, 7
    %134 = vset.pattern.permute.xlu0 %v132
    %135 = vperm.xlu0 %134, %v129
    %v136 = vpop.permute.xlu0 %135
    %v137 = vlaneseq
    %v138 = vshrl.u32 %v137, 7
    %v139 = vadd.s32 %v138, 8
    %140 = vset.pattern.permute.xlu0 %v139
    %141 = vperm.xlu0 %140, %v129
    %v142 = vpop.permute.xlu0 %141
    %v145 = vmul.f32 %v127, %v136
    %v146 = vmul.f32 %v127, %v142
    %v147 = vmul.f32 %v128, %v136
    %v148 = vmul.f32 %v128, %v142
    %v149 = vadd.f32 %v116, %v145
    %v150 = vadd.f32 %v117, %v146
    %v151 = vadd.f32 %v118, %v147
    %v152 = vadd.f32 %v119, %v148
    %vm153 = vcmask 770552
    %v154 = vsel %vm153, %v71, -inf
    %155 = vmax.xlane.f32.xlu0 %v154
    %v156 = vpop.xlane.xlu0 %155
    %v157 = vsel %vm153, %v72, -inf
    %158 = vmax.xlane.f32.xlu0 %v157
    %v159 = vpop.xlane.xlu0 %158
    %v160 = vperm.slane %v156, 0
    %v161 = vperm.slane %v159, 0
    %v162 = vperm.slane %v83, 2
    %v164 = vlaneseq
    %v165 = vshrl.u32 %v164, 7
    %167 = vset.pattern.permute.xlu0 %v165
    %168 = vperm.xlu0 %167, %v162
    %v169 = vpop.permute.xlu0 %168
    %v170 = vlaneseq
    %v171 = vshrl.u32 %v170, 7
    %v172 = vadd.s32 %v171, 8
    %173 = vset.pattern.permute.xlu0 %v172
    %174 = vperm.xlu0 %173, %v162
    %v175 = vpop.permute.xlu0 %174
    %v178 = vmul.f32 %v160, %v169
    %v179 = vmul.f32 %v160, %v175
    %v180 = vmul.f32 %v161, %v169
    %v181 = vmul.f32 %v161, %v175
    %v182 = vadd.f32 %v149, %v178
    %v183 = vadd.f32 %v150, %v179
    %v184 = vadd.f32 %v151, %v180
    %v185 = vadd.f32 %v152, %v181
    %vm186 = vcmask 1032952
    %v187 = vsel %vm186, %v71, -inf
    %188 = vmax.xlane.f32.xlu0 %v187
    %v189 = vpop.xlane.xlu0 %188
    %v190 = vsel %vm186, %v72, -inf
    %191 = vmax.xlane.f32.xlu0 %v190
    %v192 = vpop.xlane.xlu0 %191
    %v193 = vperm.slane %v189, 0
    %v194 = vperm.slane %v192, 0
    %v195 = vperm.slane %v83, 3
    %v197 = vlaneseq
    %v198 = vshrl.u32 %v197, 7
    %200 = vset.pattern.permute.xlu0 %v198
    %201 = vperm.xlu0 %200, %v195
    %v202 = vpop.permute.xlu0 %201
    %v203 = vlaneseq
    %v204 = vshrl.u32 %v203, 7
    %v205 = vadd.s32 %v204, 8
    %206 = vset.pattern.permute.xlu0 %v205
    %207 = vperm.xlu0 %206, %v195
    %v208 = vpop.permute.xlu0 %207
    %v211 = vmul.f32 %v193, %v202
    %v212 = vmul.f32 %v193, %v208
    %v213 = vmul.f32 %v194, %v202
    %v214 = vmul.f32 %v194, %v208
    %v215 = vadd.f32 %v182, %v211
    %v216 = vadd.f32 %v183, %v212
    %v217 = vadd.f32 %v184, %v213
    %v218 = vadd.f32 %v185, %v214
    %v219 = vperm.slane %v71, 4
    %v220 = vperm.slane %v72, 4
    %v223 = vsel %vm87, %v219, -inf
    %224 = vmax.xlane.f32.xlu0 %v223
    %v225 = vpop.xlane.xlu0 %224
    %v226 = vsel %vm87, %v220, -inf
    %227 = vmax.xlane.f32.xlu0 %v226
    %v228 = vpop.xlane.xlu0 %227
    %v229 = vmax.f32 %v71, %v225
    %v230 = vmax.f32 %v72, %v228
    %232 = vset.pattern.permute.xlu0 127
    %233 = vperm.xlu0 %232, %v229
    %v234 = vpop.permute.xlu0 %233
    %v237 = vunpack.c.l.s4 839922192
    %v238 = vunpack.c.0.s8 %v237
    %v239 = vperm.slane %v234, %v238
    %241 = vset.pattern.permute.xlu0 127
    %242 = vperm.xlu0 %241, %v230
    %v243 = vpop.permute.xlu0 %242
    %v246 = vunpack.c.l.s4 839922192
    %v247 = vunpack.c.0.s8 %v246
    %v248 = vperm.slane %v243, %v247
    %v249 = vperm.slane %v83, 4
    %v251 = vrot.slane %v249, 1
    %v254 = vmul.f32 %v239, %v249
    %v255 = vmul.f32 %v248, %v251
    %v258 = vperm.slane %v254, 0
    %v259 = vperm.slane %v255, 0
    %v260 = vlaneseq
    %v261 = vshrl.u32 %v260, 7
    %263 = vset.pattern.permute.xlu0 %v261
    %264 = vperm.xlu0 %263, %v258
    %v265 = vpop.permute.xlu0 %264
    %v266 = vlaneseq
    %v267 = vshrl.u32 %v266, 7
    %v268 = vadd.s32 %v267, 8
    %269 = vset.pattern.permute.xlu0 %v268
    %270 = vperm.xlu0 %269, %v258
    %v271 = vpop.permute.xlu0 %270
    %v272 = vlaneseq
    %v273 = vshrl.u32 %v272, 7
    %275 = vset.pattern.permute.xlu0 %v273
    %276 = vperm.xlu0 %275, %v259
    %v277 = vpop.permute.xlu0 %276
    %v278 = vlaneseq
    %v279 = vshrl.u32 %v278, 7
    %v280 = vadd.s32 %v279, 8
    %281 = vset.pattern.permute.xlu0 %v280
    %282 = vperm.xlu0 %281, %v259
    %v283 = vpop.permute.xlu0 %282
    %v288 = vadd.f32 %v215, %v265
    %v289 = vadd.f32 %v216, %v271
    %v290 = vadd.f32 %v217, %v277
    %v291 = vadd.f32 %v218, %v283
    %292 = vrot.lane.b32.xlu0 %v219, 97
    %v293 = vpop.permute.xlu0 %292
    %294 = vrot.lane.b32.xlu0 %v220, 97
    %v295 = vpop.permute.xlu0 %294
    %vm298 = vcmask 253952
    %v299 = vsel %vm298, %v293, -inf
    %300 = vmax.xlane.f32.xlu0 %v299
    %v301 = vpop.xlane.xlu0 %300
    %v302 = vsel %vm298, %v295, -inf
    %303 = vmax.xlane.f32.xlu0 %v302
    %v304 = vpop.xlane.xlu0 %303
    %v305 = vperm.slane %v301, 0
    %v306 = vperm.slane %v304, 0
    %v307 = vperm.slane %v83, 5
    %v309 = vlaneseq
    %v310 = vshrl.u32 %v309, 7
    %312 = vset.pattern.permute.xlu0 %v310
    %313 = vperm.xlu0 %312, %v307
    %v314 = vpop.permute.xlu0 %313
    %v315 = vlaneseq
    %v316 = vshrl.u32 %v315, 7
    %v317 = vadd.s32 %v316, 8
    %318 = vset.pattern.permute.xlu0 %v317
    %319 = vperm.xlu0 %318, %v307
    %v320 = vpop.permute.xlu0 %319
    %v323 = vmul.f32 %v305, %v314
    %v324 = vmul.f32 %v305, %v320
    %v325 = vmul.f32 %v306, %v314
    %v326 = vmul.f32 %v306, %v320
    %v327 = vadd.f32 %v288, %v323
    %v328 = vadd.f32 %v289, %v324
    %v329 = vadd.f32 %v290, %v325
    %v330 = vadd.f32 %v291, %v326
    %vm331 = vcmask 246785
    %v332 = vsel %vm331, %v81, -inf
    %333 = vmax.xlane.f32.xlu0 %v332
    %v334 = vpop.xlane.xlu0 %333
    %v335 = vsel %vm331, %v82, -inf
    %336 = vmax.xlane.f32.xlu0 %v335
    %v337 = vpop.xlane.xlu0 %336
    %v338 = vperm.slane %v334, 1
    %v339 = vperm.slane %v337, 1
    %v340 = vperm.slane %v83, 6
    %v342 = vlaneseq
    %v343 = vshrl.u32 %v342, 7
    %345 = vset.pattern.permute.xlu0 %v343
    %346 = vperm.xlu0 %345, %v340
    %v347 = vpop.permute.xlu0 %346
    %v348 = vlaneseq
    %v349 = vshrl.u32 %v348, 7
    %v350 = vadd.s32 %v349, 8
    %351 = vset.pattern.permute.xlu0 %v350
    %352 = vperm.xlu0 %351, %v340
    %v353 = vpop.permute.xlu0 %352
    %v356 = vmul.f32 %v338, %v347
    %v357 = vmul.f32 %v338, %v353
    %v358 = vmul.f32 %v339, %v347
    %v359 = vmul.f32 %v339, %v353
    %v360 = vadd.f32 %v356, 0.0
    %v361 = vadd.f32 %v357, 0.0
    %v362 = vadd.f32 %v358, 0.0
    %v363 = vadd.f32 %v359, 0.0
    %vm364 = vcmask 509177
    %v365 = vsel %vm364, %v81, -inf
    %366 = vmax.xlane.f32.xlu0 %v365
    %v367 = vpop.xlane.xlu0 %366
    %v368 = vsel %vm364, %v82, -inf
    %369 = vmax.xlane.f32.xlu0 %v368
    %v370 = vpop.xlane.xlu0 %369
    %v371 = vperm.slane %v367, 1
    %v372 = vperm.slane %v370, 1
    %v373 = vperm.slane %v83, 7
    %v375 = vlaneseq
    %v376 = vshrl.u32 %v375, 7
    %378 = vset.pattern.permute.xlu0 %v376
    %379 = vperm.xlu0 %378, %v373
    %v380 = vpop.permute.xlu0 %379
    %v381 = vlaneseq
    %v382 = vshrl.u32 %v381, 7
    %v383 = vadd.s32 %v382, 8
    %384 = vset.pattern.permute.xlu0 %v383
    %385 = vperm.xlu0 %384, %v373
    %v386 = vpop.permute.xlu0 %385
    %v389 = vmul.f32 %v371, %v380
    %v390 = vmul.f32 %v371, %v386
    %v391 = vmul.f32 %v372, %v380
    %v392 = vmul.f32 %v372, %v386
    %v393 = vadd.f32 %v360, %v389
    %v394 = vadd.f32 %v361, %v390
    %v395 = vadd.f32 %v362, %v391
    %v396 = vadd.f32 %v363, %v392
    %vm397 = vcmask 771577
    %v398 = vsel %vm397, %v81, -inf
    %399 = vmax.xlane.f32.xlu0 %v398
    %v400 = vpop.xlane.xlu0 %399
    %v401 = vsel %vm397, %v82, -inf
    %402 = vmax.xlane.f32.xlu0 %v401
    %v403 = vpop.xlane.xlu0 %402
    %v404 = vperm.slane %v400, 1
    %v405 = vperm.slane %v403, 1
    %v406 = vperm.slane %v84, 0
    %v408 = vlaneseq
    %v409 = vshrl.u32 %v408, 7
    %411 = vset.pattern.permute.xlu0 %v409
    %412 = vperm.xlu0 %411, %v406
    %v413 = vpop.permute.xlu0 %412
    %v414 = vlaneseq
    %v415 = vshrl.u32 %v414, 7
    %v416 = vadd.s32 %v415, 8
    %417 = vset.pattern.permute.xlu0 %v416
    %418 = vperm.xlu0 %417, %v406
    %v419 = vpop.permute.xlu0 %418
    %v422 = vmul.f32 %v404, %v413
    %v423 = vmul.f32 %v404, %v419
    %v424 = vmul.f32 %v405, %v413
    %v425 = vmul.f32 %v405, %v419
    %v426 = vadd.f32 %v393, %v422
    %v427 = vadd.f32 %v394, %v423
    %v428 = vadd.f32 %v395, %v424
    %v429 = vadd.f32 %v396, %v425
    %vm430 = vcmask 1033977
    %v431 = vsel %vm430, %v81, -inf
    %432 = vmax.xlane.f32.xlu0 %v431
    %v433 = vpop.xlane.xlu0 %432
    %v434 = vsel %vm430, %v82, -inf
    %435 = vmax.xlane.f32.xlu0 %v434
    %v436 = vpop.xlane.xlu0 %435
    %v437 = vperm.slane %v433, 1
    %v438 = vperm.slane %v436, 1
    %v439 = vperm.slane %v84, 1
    %v441 = vlaneseq
    %v442 = vshrl.u32 %v441, 7
    %444 = vset.pattern.permute.xlu0 %v442
    %445 = vperm.xlu0 %444, %v439
    %v446 = vpop.permute.xlu0 %445
    %v447 = vlaneseq
    %v448 = vshrl.u32 %v447, 7
    %v449 = vadd.s32 %v448, 8
    %450 = vset.pattern.permute.xlu0 %v449
    %451 = vperm.xlu0 %450, %v439
    %v452 = vpop.permute.xlu0 %451
    %v455 = vmul.f32 %v437, %v446
    %v456 = vmul.f32 %v437, %v452
    %v457 = vmul.f32 %v438, %v446
    %v458 = vmul.f32 %v438, %v452
    %v459 = vadd.f32 %v426, %v455
    %v460 = vadd.f32 %v427, %v456
    %v461 = vadd.f32 %v428, %v457
    %v462 = vadd.f32 %v429, %v458
    %v465 = vperm.slane %v81, 5
    %v466 = vperm.slane %v82, 5
    %v469 = vsel %vm331, %v465, -inf
    %470 = vmax.xlane.f32.xlu0 %v469
    %v471 = vpop.xlane.xlu0 %470
    %v472 = vsel %vm331, %v466, -inf
    %473 = vmax.xlane.f32.xlu0 %v472
    %v474 = vpop.xlane.xlu0 %473
    %v475 = vmax.f32 %v81, %v471
    %v476 = vmax.f32 %v82, %v474
    %478 = vset.pattern.permute.xlu0 127
    %479 = vperm.xlu0 %478, %v475
    %v480 = vpop.permute.xlu0 %479
    %v483 = vunpack.c.l.s4 839922192
    %v484 = vunpack.c.0.s8 %v483
    %v485 = vperm.slane %v480, %v484
    %487 = vset.pattern.permute.xlu0 127
    %488 = vperm.xlu0 %487, %v476
    %v489 = vpop.permute.xlu0 %488
    %v492 = vunpack.c.l.s4 839922192
    %v493 = vunpack.c.0.s8 %v492
    %v494 = vperm.slane %v489, %v493
    %v495 = vperm.slane %v84, 2
    %v497 = vrot.slane %v495, 7
    %v500 = vmul.f32 %v485, %v497
    %v501 = vmul.f32 %v494, %v495
    %v504 = vperm.slane %v500, 1
    %v505 = vperm.slane %v501, 1
    %v506 = vlaneseq
    %v507 = vshrl.u32 %v506, 7
    %509 = vset.pattern.permute.xlu0 %v507
    %510 = vperm.xlu0 %509, %v504
    %v511 = vpop.permute.xlu0 %510
    %v512 = vlaneseq
    %v513 = vshrl.u32 %v512, 7
    %v514 = vadd.s32 %v513, 8
    %515 = vset.pattern.permute.xlu0 %v514
    %516 = vperm.xlu0 %515, %v504
    %v517 = vpop.permute.xlu0 %516
    %v518 = vlaneseq
    %v519 = vshrl.u32 %v518, 7
    %521 = vset.pattern.permute.xlu0 %v519
    %522 = vperm.xlu0 %521, %v505
    %v523 = vpop.permute.xlu0 %522
    %v524 = vlaneseq
    %v525 = vshrl.u32 %v524, 7
    %v526 = vadd.s32 %v525, 8
    %527 = vset.pattern.permute.xlu0 %v526
    %528 = vperm.xlu0 %527, %v505
    %v529 = vpop.permute.xlu0 %528
    %v534 = vadd.f32 %v459, %v511
    %v535 = vadd.f32 %v460, %v517
    %v536 = vadd.f32 %v461, %v523
    %v537 = vadd.f32 %v462, %v529
    %538 = vrot.lane.b32.xlu0 %v465, 97
    %v539 = vpop.permute.xlu0 %538
    %540 = vrot.lane.b32.xlu0 %v466, 97
    %v541 = vpop.permute.xlu0 %540
    %vm544 = vcmask 254977
    %v545 = vsel %vm544, %v539, -inf
    %546 = vmax.xlane.f32.xlu0 %v545
    %v547 = vpop.xlane.xlu0 %546
    %v548 = vsel %vm544, %v541, -inf
    %549 = vmax.xlane.f32.xlu0 %v548
    %v550 = vpop.xlane.xlu0 %549
    %v551 = vperm.slane %v547, 1
    %v552 = vperm.slane %v550, 1
    %v553 = vperm.slane %v84, 3
    %v555 = vlaneseq
    %v556 = vshrl.u32 %v555, 7
    %558 = vset.pattern.permute.xlu0 %v556
    %559 = vperm.xlu0 %558, %v553
    %v560 = vpop.permute.xlu0 %559
    %v561 = vlaneseq
    %v562 = vshrl.u32 %v561, 7
    %v563 = vadd.s32 %v562, 8
    %564 = vset.pattern.permute.xlu0 %v563
    %565 = vperm.xlu0 %564, %v553
    %v566 = vpop.permute.xlu0 %565
    %v569 = vmul.f32 %v551, %v560
    %v570 = vmul.f32 %v551, %v566
    %v571 = vmul.f32 %v552, %v560
    %v572 = vmul.f32 %v552, %v566
    %v573 = vadd.f32 %v534, %v569
    %v574 = vadd.f32 %v535, %v570
    %v575 = vadd.f32 %v536, %v571
    %v576 = vadd.f32 %v537, %v572
    %vm577 = vcmask 248835
    %v578 = vsel %vm577, %v71, -inf
    %579 = vmax.xlane.f32.xlu0 %v578
    %v580 = vpop.xlane.xlu0 %579
    %v581 = vsel %vm577, %v72, -inf
    %582 = vmax.xlane.f32.xlu0 %v581
    %v583 = vpop.xlane.xlu0 %582
    %v584 = vperm.slane %v580, 3
    %v585 = vperm.slane %v583, 3
    %v586 = vperm.slane %v84, 4
    %v588 = vlaneseq
    %v589 = vshrl.u32 %v588, 7
    %591 = vset.pattern.permute.xlu0 %v589
    %592 = vperm.xlu0 %591, %v586
    %v593 = vpop.permute.xlu0 %592
    %v594 = vlaneseq
    %v595 = vshrl.u32 %v594, 7
    %v596 = vadd.s32 %v595, 8
    %597 = vset.pattern.permute.xlu0 %v596
    %598 = vperm.xlu0 %597, %v586
    %v599 = vpop.permute.xlu0 %598
    %v602 = vmul.f32 %v584, %v593
    %v603 = vmul.f32 %v584, %v599
    %v604 = vmul.f32 %v585, %v593
    %v605 = vmul.f32 %v585, %v599
    %v606 = vadd.f32 %v602, 0.0
    %v607 = vadd.f32 %v603, 0.0
    %v608 = vadd.f32 %v604, 0.0
    %v609 = vadd.f32 %v605, 0.0
    %vm610 = vcmask 511227
    %v611 = vsel %vm610, %v71, -inf
    %612 = vmax.xlane.f32.xlu0 %v611
    %v613 = vpop.xlane.xlu0 %612
    %v614 = vsel %vm610, %v72, -inf
    %615 = vmax.xlane.f32.xlu0 %v614
    %v616 = vpop.xlane.xlu0 %615
    %v617 = vperm.slane %v613, 3
    %v618 = vperm.slane %v616, 3
    %v619 = vperm.slane %v84, 5
    %v621 = vlaneseq
    %v622 = vshrl.u32 %v621, 7
    %624 = vset.pattern.permute.xlu0 %v622
    %625 = vperm.xlu0 %624, %v619
    %v626 = vpop.permute.xlu0 %625
    %v627 = vlaneseq
    %v628 = vshrl.u32 %v627, 7
    %v629 = vadd.s32 %v628, 8
    %630 = vset.pattern.permute.xlu0 %v629
    %631 = vperm.xlu0 %630, %v619
    %v632 = vpop.permute.xlu0 %631
    %v635 = vmul.f32 %v617, %v626
    %v636 = vmul.f32 %v617, %v632
    %v637 = vmul.f32 %v618, %v626
    %v638 = vmul.f32 %v618, %v632
    %v639 = vadd.f32 %v606, %v635
    %v640 = vadd.f32 %v607, %v636
    %v641 = vadd.f32 %v608, %v637
    %v642 = vadd.f32 %v609, %v638
    %vm643 = vcmask 773627
    %v644 = vsel %vm643, %v71, -inf
    %645 = vmax.xlane.f32.xlu0 %v644
    %v646 = vpop.xlane.xlu0 %645
    %v647 = vsel %vm643, %v72, -inf
    %648 = vmax.xlane.f32.xlu0 %v647
    %v649 = vpop.xlane.xlu0 %648
    %v650 = vperm.slane %v646, 3
    %v651 = vperm.slane %v649, 3
    %v652 = vperm.slane %v84, 6
    %v654 = vlaneseq
    %v655 = vshrl.u32 %v654, 7
    %657 = vset.pattern.permute.xlu0 %v655
    %658 = vperm.xlu0 %657, %v652
    %v659 = vpop.permute.xlu0 %658
    %v660 = vlaneseq
    %v661 = vshrl.u32 %v660, 7
    %v662 = vadd.s32 %v661, 8
    %663 = vset.pattern.permute.xlu0 %v662
    %664 = vperm.xlu0 %663, %v652
    %v665 = vpop.permute.xlu0 %664
    %v668 = vmul.f32 %v650, %v659
    %v669 = vmul.f32 %v650, %v665
    %v670 = vmul.f32 %v651, %v659
    %v671 = vmul.f32 %v651, %v665
    %v672 = vadd.f32 %v639, %v668
    %v673 = vadd.f32 %v640, %v669
    %v674 = vadd.f32 %v641, %v670
    %v675 = vadd.f32 %v642, %v671
    %vm676 = vcmask 1036027
    %v677 = vsel %vm676, %v71, -inf
    %678 = vmax.xlane.f32.xlu0 %v677
    %v679 = vpop.xlane.xlu0 %678
    %v680 = vsel %vm676, %v72, -inf
    %681 = vmax.xlane.f32.xlu0 %v680
    %v682 = vpop.xlane.xlu0 %681
    %v683 = vperm.slane %v679, 3
    %v684 = vperm.slane %v682, 3
    %v685 = vperm.slane %v84, 7
    %v687 = vlaneseq
    %v688 = vshrl.u32 %v687, 7
    %690 = vset.pattern.permute.xlu0 %v688
    %691 = vperm.xlu0 %690, %v685
    %v692 = vpop.permute.xlu0 %691
    %v693 = vlaneseq
    %v694 = vshrl.u32 %v693, 7
    %v695 = vadd.s32 %v694, 8
    %696 = vset.pattern.permute.xlu0 %v695
    %697 = vperm.xlu0 %696, %v685
    %v698 = vpop.permute.xlu0 %697
    %v701 = vmul.f32 %v683, %v692
    %v702 = vmul.f32 %v683, %v698
    %v703 = vmul.f32 %v684, %v692
    %v704 = vmul.f32 %v684, %v698
    %v705 = vadd.f32 %v672, %v701
    %v706 = vadd.f32 %v673, %v702
    %v707 = vadd.f32 %v674, %v703
    %v708 = vadd.f32 %v675, %v704
    %v709 = vperm.slane %v71, 7
    %v710 = vperm.slane %v72, 7
    %v713 = vsel %vm577, %v709, -inf
    %714 = vmax.xlane.f32.xlu0 %v713
    %v715 = vpop.xlane.xlu0 %714
    %v716 = vsel %vm577, %v710, -inf
    %717 = vmax.xlane.f32.xlu0 %v716
    %v718 = vpop.xlane.xlu0 %717
    %v719 = vmax.f32 %v71, %v715
    %v720 = vmax.f32 %v72, %v718
    %722 = vset.pattern.permute.xlu0 127
    %723 = vperm.xlu0 %722, %v719
    %v724 = vpop.permute.xlu0 %723
    %v727 = vunpack.c.l.s4 839922192
    %v728 = vunpack.c.0.s8 %v727
    %v729 = vperm.slane %v724, %v728
    %731 = vset.pattern.permute.xlu0 127
    %732 = vperm.xlu0 %731, %v720
    %v733 = vpop.permute.xlu0 %732
    %v736 = vunpack.c.l.s4 839922192
    %v737 = vunpack.c.0.s8 %v736
    %v738 = vperm.slane %v733, %v737
    %v739 = vperm.slane %v85, 0
    %v741 = vrot.slane %v739, 5
    %v742 = vrot.slane %v739, 6
    %v745 = vmul.f32 %v729, %v741
    %v746 = vmul.f32 %v738, %v742
    %v749 = vperm.slane %v745, 3
    %v750 = vperm.slane %v746, 3
    %v751 = vlaneseq
    %v752 = vshrl.u32 %v751, 7
    %754 = vset.pattern.permute.xlu0 %v752
    %755 = vperm.xlu0 %754, %v749
    %v756 = vpop.permute.xlu0 %755
    %v757 = vlaneseq
    %v758 = vshrl.u32 %v757, 7
    %v759 = vadd.s32 %v758, 8
    %760 = vset.pattern.permute.xlu0 %v759
    %761 = vperm.xlu0 %760, %v749
    %v762 = vpop.permute.xlu0 %761
    %v763 = vlaneseq
    %v764 = vshrl.u32 %v763, 7
    %766 = vset.pattern.permute.xlu0 %v764
    %767 = vperm.xlu0 %766, %v750
    %v768 = vpop.permute.xlu0 %767
    %v769 = vlaneseq
    %v770 = vshrl.u32 %v769, 7
    %v771 = vadd.s32 %v770, 8
    %772 = vset.pattern.permute.xlu0 %v771
    %773 = vperm.xlu0 %772, %v750
    %v774 = vpop.permute.xlu0 %773
    %v779 = vadd.f32 %v705, %v756
    %v780 = vadd.f32 %v706, %v762
    %v781 = vadd.f32 %v707, %v768
    %v782 = vadd.f32 %v708, %v774
    %783 = vrot.lane.b32.xlu0 %v709, 97
    %v784 = vpop.permute.xlu0 %783
    %785 = vrot.lane.b32.xlu0 %v710, 97
    %v786 = vpop.permute.xlu0 %785
    %vm789 = vcmask 257027
    %v790 = vsel %vm789, %v784, -inf
    %791 = vmax.xlane.f32.xlu0 %v790
    %v792 = vpop.xlane.xlu0 %791
    %v793 = vsel %vm789, %v786, -inf
    %794 = vmax.xlane.f32.xlu0 %v793
    %v795 = vpop.xlane.xlu0 %794
    %v796 = vperm.slane %v792, 3
    %v797 = vperm.slane %v795, 3
    %v798 = vperm.slane %v85, 1
    %v800 = vlaneseq
    %v801 = vshrl.u32 %v800, 7
    %803 = vset.pattern.permute.xlu0 %v801
    %804 = vperm.xlu0 %803, %v798
    %v805 = vpop.permute.xlu0 %804
    %v806 = vlaneseq
    %v807 = vshrl.u32 %v806, 7
    %v808 = vadd.s32 %v807, 8
    %809 = vset.pattern.permute.xlu0 %v808
    %810 = vperm.xlu0 %809, %v798
    %v811 = vpop.permute.xlu0 %810
    %v814 = vmul.f32 %v796, %v805
    %v815 = vmul.f32 %v796, %v811
    %v816 = vmul.f32 %v797, %v805
    %v817 = vmul.f32 %v797, %v811
    %v818 = vadd.f32 %v779, %v814
    %v819 = vadd.f32 %v780, %v815
    %v820 = vadd.f32 %v781, %v816
    %v821 = vadd.f32 %v782, %v817
    %v822 = vadd.f32 %v327, %v573
    %v823 = vadd.f32 %v328, %v574
    %v824 = vadd.f32 %v329, %v575
    %v825 = vadd.f32 %v330, %v576
    %v826 = vadd.f32 %v822, %v818
    %v827 = vadd.f32 %v823, %v819
    %v828 = vadd.f32 %v824, %v820
    %v829 = vadd.f32 %v825, %v821
    %v831 = vperm.slane %v86, 0
    %v832 = vlaneseq
    %v833 = vshrl.u32 %v832, 7
    %835 = vset.pattern.permute.xlu0 %v833
    %836 = vperm.xlu0 %835, %v831
    %v837 = vpop.permute.xlu0 %836
    %v838 = vlaneseq
    %v839 = vshrl.u32 %v838, 7
    %v840 = vadd.s32 %v839, 8
    %841 = vset.pattern.permute.xlu0 %v840
    %842 = vperm.xlu0 %841, %v831
    %v843 = vpop.permute.xlu0 %842
    %v846 = vadd.f32 %v826, %v837
    %v847 = vadd.f32 %v827, %v843
    %v848 = vadd.f32 %v828, %v837
    %v849 = vadd.f32 %v829, %v843
    %v850 = vld [vmem:[%s4] sm:$0x1]
    %v851 = vld [vmem:[%s4 + $0x1] sm:$0x1]
    %v852 = vld [vmem:[%s4 + $0x2] sm:$0x1]
    %v853 = vld [vmem:[%s4 + $0x3] sm:$0x1]
    %v854 = vperm.slane %v852, 0
    %v856 = vlaneseq
    %v857 = vshrl.u32 %v856, 7
    %859 = vset.pattern.permute.xlu0 %v857
    %860 = vperm.xlu0 %859, %v854
    %v861 = vpop.permute.xlu0 %860
    %v862 = vlaneseq
    %v863 = vshrl.u32 %v862, 7
    %v864 = vadd.s32 %v863, 8
    %865 = vset.pattern.permute.xlu0 %v864
    %866 = vperm.xlu0 %865, %v854
    %v867 = vpop.permute.xlu0 %866
    %v870 = vsub.f32 %v846, %v861
    %v871 = vsub.f32 %v847, %v867
    %v872 = vsub.f32 %v848, %v861
    %v873 = vsub.f32 %v849, %v867
    %v874 = vadd.f32 %v853, 1e-05
    %v875 = vrsqrt.pop %v874
    %v876 = vmul.f32 %v875, %v874
    %v877 = vmul.f32 %v876, %v875
    %v878 = vmul.f32 0.5, %v877
    %v879 = vsub.f32 1.5, %v878
    %v880 = vmul.f32 %v875, %v879
    %vm881 = vweird.f32 %v874
    %vm882 = vweird.f32 %v875
    %vm883 = vmor %vm881, %vm882
    %v884 = vsel %vm883, %v875, %v880
    %v885 = vmul.f32 %v850, %v884
    %v886 = vperm.slane %v885, 0
    %v888 = vlaneseq
    %v889 = vshrl.u32 %v888, 7
    %891 = vset.pattern.permute.xlu0 %v889
    %892 = vperm.xlu0 %891, %v886
    %v893 = vpop.permute.xlu0 %892
    %v894 = vlaneseq
    %v895 = vshrl.u32 %v894, 7
    %v896 = vadd.s32 %v895, 8
    %897 = vset.pattern.permute.xlu0 %v896
    %898 = vperm.xlu0 %897, %v886
    %v899 = vpop.permute.xlu0 %898
    %v902 = vmul.f32 %v870, %v893
    %v903 = vmul.f32 %v871, %v899
    %v904 = vmul.f32 %v872, %v893
    %v905 = vmul.f32 %v873, %v899
    %v906 = vperm.slane %v851, 0
    %v908 = vlaneseq
    %v909 = vshrl.u32 %v908, 7
    %911 = vset.pattern.permute.xlu0 %v909
    %912 = vperm.xlu0 %911, %v906
    %v913 = vpop.permute.xlu0 %912
    %v914 = vlaneseq
    %v915 = vshrl.u32 %v914, 7
    %v916 = vadd.s32 %v915, 8
    %917 = vset.pattern.permute.xlu0 %v916
    %918 = vperm.xlu0 %917, %v906
    %v919 = vpop.permute.xlu0 %918
    %v922 = vadd.f32 %v902, %v913
    %v923 = vadd.f32 %v903, %v919
    %v924 = vadd.f32 %v904, %v913
    %v925 = vadd.f32 %v905, %v919
    %930 = vset.pattern.permute.xlu0 0
    %931 = vperm.xlu0 %930, %v922
    %v932 = vpop.permute.xlu0 %931
    %933 = vset.pattern.permute.xlu0 0
    %934 = vperm.xlu0 %933, %v923
    %v935 = vpop.permute.xlu0 %934
    %936 = vset.pattern.permute.xlu0 0
    %937 = vperm.xlu0 %936, %v924
    %v938 = vpop.permute.xlu0 %937
    %939 = vset.pattern.permute.xlu0 0
    %940 = vperm.xlu0 %939, %v925
    %v941 = vpop.permute.xlu0 %940
    %v942 = vlaneseq
    %v943 = vand.u32 %v942, 127
    %v944 = vperm.slane %v932, %v943
    %v945 = vadd.s32 %v943, 4294967288
    %v946 = vperm.slane %v935, %v945
    %vm947 = vcmask 130112
    %v948 = vsel %vm947, %v946, %v944
    %v949 = vperm.slane %v938, %v943
    %v950 = vperm.slane %v941, %v945
    %v951 = vsel %vm947, %v950, %v949
    %vm952 = vcmask 1041409
    %v953 = vsel %vm952, %v951, %v948
    %vm955 = vcmask 115712
    %v956 = vsel %vm955, %v953, -inf
    %957 = vmax.xlane.f32.xlu0 %v956
    %v958 = vpop.xlane.xlu0 %957
    %v960 = vperm.slane %v958, 0
    %v961 = vperm.slane %v958, 1
    %v964 = vsub.f32 %v922, %v960
    %v965 = vsub.f32 %v923, %v960
    %v966 = vsub.f32 %v924, %v961
    %v967 = vsub.f32 %v925, %v961
    %v968 = vmul.f32 %v964, 1.442695
    %v969 = vpow.pop %v968
    %v970 = vmul.f32 %v965, 1.442695
    %v971 = vpow.pop %v970
    %v972 = vmul.f32 %v966, 1.442695
    %v973 = vpow.pop %v972
    %v974 = vmul.f32 %v967, 1.442695
    %v975 = vpow.pop %v974
    %980 = vset.pattern.permute.xlu0 0
    %981 = vperm.xlu0 %980, %v969
    %v982 = vpop.permute.xlu0 %981
    %983 = vset.pattern.permute.xlu0 0
    %984 = vperm.xlu0 %983, %v971
    %v985 = vpop.permute.xlu0 %984
    %986 = vset.pattern.permute.xlu0 0
    %987 = vperm.xlu0 %986, %v973
    %v988 = vpop.permute.xlu0 %987
    %989 = vset.pattern.permute.xlu0 0
    %990 = vperm.xlu0 %989, %v975
    %v991 = vpop.permute.xlu0 %990
    %v992 = vperm.slane %v982, %v943
    %v993 = vperm.slane %v985, %v945
    %v994 = vsel %vm947, %v993, %v992
    %v995 = vperm.slane %v988, %v943
    %v996 = vperm.slane %v991, %v945
    %v997 = vsel %vm947, %v996, %v995
    %v998 = vsel %vm952, %v997, %v994
    %v1000 = vsel %vm955, %v998, 0.0
    %1001 = vadd.xlane.f32.xlu0 %v1000
    %v1002 = vpop.xlane.xlu0 %1001
    %v1003 = vrcp.pop %v1002
    %v1004 = vmul.f32 %v1002, %v1003
    %v1005 = vsub.f32 2.0, %v1004
    %v1006 = vmul.f32 %v1003, %v1005
    %v1008 = vperm.slane %v1006, 0
    %v1009 = vperm.slane %v1006, 1
    %v1012 = vmul.f32 %v969, %v1008
    %v1013 = vmul.f32 %v971, %v1008
    %v1014 = vmul.f32 %v973, %v1009
    %v1015 = vmul.f32 %v975, %v1009
    %1020 = vset.pattern.permute.xlu0 0
    %1021 = vperm.xlu0 %1020, %v1012
    %v1022 = vpop.permute.xlu0 %1021
    %1023 = vset.pattern.permute.xlu0 0
    %1024 = vperm.xlu0 %1023, %v1013
    %v1025 = vpop.permute.xlu0 %1024
    %1026 = vset.pattern.permute.xlu0 0
    %1027 = vperm.xlu0 %1026, %v1014
    %v1028 = vpop.permute.xlu0 %1027
    %1029 = vset.pattern.permute.xlu0 0
    %1030 = vperm.xlu0 %1029, %v1015
    %v1031 = vpop.permute.xlu0 %1030
    %v1032 = vperm.slane %v1022, %v943
    %v1033 = vperm.slane %v1025, %v945
    %v1034 = vsel %vm947, %v1033, %v1032
    %v1035 = vperm.slane %v1028, %v943
    %v1036 = vperm.slane %v1031, %v945
    %v1037 = vsel %vm947, %v1036, %v1035
    %v1038 = vsel %vm952, %v1037, %v1034
    %1040 = vst.msk [vmem:[#allocation5] sm:$0x3] %vm955, %v1038
    %v1041 = vsub.f32 %v1012, %v1008
    %v1042 = vsub.f32 %v1013, %v1008
    %v1043 = vsub.f32 %v1014, %v1009
    %v1044 = vsub.f32 %v1015, %v1009
    %v1045 = vmul.f32 %v1041, 1.442695
    %v1046 = vpow.pop %v1045
    %v1047 = vmul.f32 %v1042, 1.442695
    %v1048 = vpow.pop %v1047
    %v1049 = vmul.f32 %v1043, 1.442695
    %v1050 = vpow.pop %v1049
    %v1051 = vmul.f32 %v1044, 1.442695
    %v1052 = vpow.pop %v1051
    %1057 = vset.pattern.permute.xlu0 0
    %1058 = vperm.xlu0 %1057, %v1046
    %v1059 = vpop.permute.xlu0 %1058
    %1060 = vset.pattern.permute.xlu0 0
    %1061 = vperm.xlu0 %1060, %v1048
    %v1062 = vpop.permute.xlu0 %1061
    %1063 = vset.pattern.permute.xlu0 0
    %1064 = vperm.xlu0 %1063, %v1050
    %v1065 = vpop.permute.xlu0 %1064
    %1066 = vset.pattern.permute.xlu0 0
    %1067 = vperm.xlu0 %1066, %v1052
    %v1068 = vpop.permute.xlu0 %1067
    %v1069 = vperm.slane %v1059, %v943
    %v1070 = vperm.slane %v1062, %v945
    %v1071 = vsel %vm947, %v1070, %v1069
    %v1072 = vperm.slane %v1065, %v943
    %v1073 = vperm.slane %v1068, %v945
    %v1074 = vsel %vm947, %v1073, %v1072
    %v1075 = vsel %vm952, %v1074, %v1071
    %v1077 = vsel %vm955, %v1075, 0.0
    %1078 = vadd.xlane.f32.xlu0 %v1077
    %v1079 = vpop.xlane.xlu0 %1078
    %v1080 = vlog2.pop %v1079
    %v1081 = vmul.f32 %v1080, 0.6931472
    %v1082 = vadd.f32 %v1081, %v1006
    %v1084 = vperm.slane %v1082, 0
    %v1085 = vperm.slane %v1082, 1
    %v1088 = vsub.f32 %v1012, %v1084
    %v1089 = vsub.f32 %v1013, %v1084
    %v1090 = vsub.f32 %v1014, %v1085
    %v1091 = vsub.f32 %v1015, %v1085
    %v1092 = vld [vmem:[%s5] sm:$0x3]
    %1093 = vset.pattern.permute.xlu0 0
    %1094 = vperm.xlu0 %1093, %v1092
    %v1095 = vpop.permute.xlu0 %1094
    %vm1096 = vcmp.eq.s32.totalorder %v943, %v1095
    %v1097 = vsub.f32 0.0, %v1088
    %v1098 = vsub.f32 0.0, %v1089
    %v1099 = vsub.f32 0.0, %v1090
    %v1100 = vsub.f32 0.0, %v1091
    %1105 = vset.pattern.permute.xlu0 0
    %1106 = vperm.xlu0 %1105, %v1097
    %v1107 = vpop.permute.xlu0 %1106
    %1108 = vset.pattern.permute.xlu0 0
    %1109 = vperm.xlu0 %1108, %v1098
    %v1110 = vpop.permute.xlu0 %1109
    %1111 = vset.pattern.permute.xlu0 0
    %1112 = vperm.xlu0 %1111, %v1099
    %v1113 = vpop.permute.xlu0 %1112
    %1114 = vset.pattern.permute.xlu0 0
    %1115 = vperm.xlu0 %1114, %v1100
    %v1116 = vpop.permute.xlu0 %1115
    %v1117 = vperm.slane %v1107, %v943
    %v1118 = vperm.slane %v1110, %v945
    %v1119 = vsel %vm947, %v1118, %v1117
    %v1120 = vperm.slane %v1113, %v943
    %v1121 = vperm.slane %v1116, %v945
    %v1122 = vsel %vm947, %v1121, %v1120
    %v1123 = vsel %vm952, %v1122, %v1119
    %v1125 = vsel %vm1096, %v1123, 0.0
    %v1126 = vsel %vm955, %v1125, 0.0
    %1127 = vadd.xlane.f32.xlu0 %v1126
    %v1128 = vpop.xlane.xlu0 %1127
    %vm1129 = vcmask 1024
    %1130 = vst.msk [vmem:[%s7] sm:$0x3] %vm1129, %v1128
    // Predicated region
    $region30: #{bertxqa_head.1} parent=1 // pred_check
      _
    $region31: #{bertxqa_head.1} parent=1 // pred_check_branch
      %1132 = sbr.rel (0) target = $region33
    $region32: #{bertxqa_head.1} parent=1 // pred_region
      %1134 = vsyncadd [#allocation3], 0
      %s1136 = sshll.u32 [#allocation5], 4
      %s1137 = int_to_ptr.vmem [resolvable:$true] %s1136
      %s1138 = sshll.u32 %s6, 4
      %s1139 = int_to_ptr.hbm [resolvable:$true] %s1138
      %1141 = dma.vmem_to_hbm [thread:$0]  %s1137, 32, %s1139, [#allocation3]
    $region33: #{bertxqa_head.1} parent=1 // pred_fallthru
      _
    // Predicated region
    $region34: #{bertxqa_head.1} parent=1 // pred_check
      _
    $region35: #{bertxqa_head.1} parent=1 // pred_check_branch
      %1143 = sbr.rel (0) target = $region37
    $region36: #{bertxqa_head.1} parent=1 // pred_region
      _
    $region37: #{bertxqa_head.1} parent=1 // pred_fallthru
      _
    // Predicated region
    $region38: #{bertxqa_head.1} parent=1 // pred_check
      _
    $region39: #{bertxqa_head.1} parent=1 // pred_check_branch
      %1145 = sbr.rel (0) target = $region41
    $region40: #{bertxqa_head.1} parent=1 // pred_region
      %1147 = dma.done [#allocation3], 32
    $region41: #{bertxqa_head.1} parent=1 // pred_fallthru
      _
    // Predicated region
    $region42: #{bertxqa_head.1} parent=1 // pred_check
      _
    $region43: #{bertxqa_head.1} parent=1 // pred_check_branch
      %1149 = sbr.rel (0) target = $region45
    $region44: #{bertxqa_head.1} parent=1 // pred_region
      _
    $region45: #{bertxqa_head.1} parent=1 // pred_fallthru
      _
    %1150 = vsyncpa [#allocation3], 1
    %1151 = vsyncpa [#allocation4], 1

</llo_original>
